<compile_context>
chip_gen: v7x
topology: tpu7x:2x2x1
jax: 0.10.0
libtpu: 0.0.40
codegen_flags: <defaults>
</compile_context>

<pallas_src>
import jax
import jax.numpy as jnp
from jax.experimental import pallas as pl
from jax.experimental.pallas import tpu as pltpu


# ---------------------------------------------------------------------------
# helpers
# ---------------------------------------------------------------------------
def _round_up(x, m):
    return ((x + m - 1) // m) * m


def _pad2(x, rows, cols):
    out = jnp.zeros((rows, cols), x.dtype)
    return out.at[: x.shape[0], : x.shape[1]].set(x)


# ---------------------------------------------------------------------------
# Pallas kernel: 2x GCNConv(+relu) with pre-selected 2nd-layer rows + linear + sigmoid
# ---------------------------------------------------------------------------
def _edge_conv_kernel(x_ref,      # bf16 [n_pad, D]       line-graph node features
                      a_ref,      # bf16 [n_pad, n_pad]    normalized adjacency A_hat
                      asel_ref,   # bf16 [k_pad, n_pad]    A_hat[index01] (pre-gathered)
                      w_ref,      # bf16 [3, D, D]         packed W1 / W2 / W_lin
                      b_ref,      # f32  [3, D]            packed b1 / b2 / b_lin
                      out_ref):   # f32  [k_pad, D]        lane-dense output
    # --- GCNConv 1 over all line-graph nodes: relu(A_hat @ (X @ W1) + b1) ---
    h = jnp.dot(x_ref[...], w_ref[0], preferred_element_type=jnp.float32)
    h = jnp.dot(a_ref[...], h.astype(jnp.bfloat16),
                preferred_element_type=jnp.float32)
    h = jnp.maximum(h + b_ref[pl.ds(0, 1), :], 0.0)

    # --- GCNConv 2 restricted to the selected rows (selection commutes with
    #     the elementwise bias + ReLU): relu(A_hat[index01] @ (H @ W2) + b2) ---
    h = jnp.dot(h.astype(jnp.bfloat16), w_ref[1],
                preferred_element_type=jnp.float32)
    s = jnp.dot(asel_ref[...], h.astype(jnp.bfloat16),
                preferred_element_type=jnp.float32)
    s = jnp.maximum(s + b_ref[pl.ds(1, 1), :], 0.0)

    # --- Linear + sigmoid (f32 bias / activation), one full unmasked store ---
    y = jnp.dot(s.astype(jnp.bfloat16), w_ref[2],
                preferred_element_type=jnp.float32)
    out_ref[...] = jax.nn.sigmoid(y + b_ref[pl.ds(2, 1), :])


# ---------------------------------------------------------------------------
# Plain-JAX glue (graph construction)
# ---------------------------------------------------------------------------
def to_line_graph_features(g_edge_index, x):
    # concat features of the two endpoints of each graph edge
    return jnp.concatenate([x[g_edge_index[0]], x[g_edge_index[1]]], axis=1)


def gcn_norm_dense(edge_index, num_nodes):
    # Dense PyG gcn_norm: add self loops, symmetric normalization.
    # NOTE: matches PyG exactly for symmetric edge lists (as used here).
    src, dst = edge_index[0], edge_index[1]
    a = jnp.zeros((num_nodes, num_nodes), jnp.float32).at[dst, src].add(1.0)
    a = a + jnp.eye(num_nodes, dtype=jnp.float32)
    deg = a.sum(axis=1)
    dinv = jnp.where(deg > 0, 1.0 / jnp.sqrt(deg), 0.0)
    return dinv[:, None] * a * dinv[None, :]


def edge_conv_gnn_forward(params, x, g_edge_index, lg_edge_index, index01):
    # TODO(synk): for large graphs, tile the A_hat @ H propagation over row blocks
    #             via BlockSpec (size tiles for v7x's 64 MiB VMEM / v5e's 16 MiB
    #             scoped default, mark the row axis "parallel" for v7x's 2 TCs),
    #             and move the A_hat scatter-add build in-kernel via scalar-
    #             prefetched edge tables instead of a dense wrapper build.
    x_lg = to_line_graph_features(g_edge_index, x)            # [E_g, 2*input_dim]
    n_lg = x_lg.shape[0]
    a_hat = gcn_norm_dense(lg_edge_index, n_lg)               # [E_g, E_g] f32

    f_in = x_lg.shape[1]
    hid = params["w1"].shape[1]
    out_dim = params["w_lin"].shape[1]
    k = index01.shape[0]

    # Padded sizes: node axis only to the bf16 sublane pack (16); channel /
    # contraction axes to 128 lanes; selected-row axis to 8 sublanes.
    n_pad = _round_up(n_lg, 16)
    d = max(_round_up(f_in, 128), _round_up(hid, 128), _round_up(out_dim, 128))
    k_pad = _round_up(k, 8)

    # bf16 MXU operands (zero-padded), f32 biases.
    x_p = _pad2(x_lg, n_pad, d).astype(jnp.bfloat16)
    a_p = _pad2(a_hat, n_pad, n_pad).astype(jnp.bfloat16)
    a_sel = _pad2(a_hat[index01], k_pad, n_pad).astype(jnp.bfloat16)  # clamped gather
    w_p = jnp.stack([_pad2(params["w1"], d, d),
                     _pad2(params["w2"], d, d),
                     _pad2(params["w_lin"], d, d)]).astype(jnp.bfloat16)   # [3, D, D]
    b_p = jnp.stack([_pad2(params["b1"], 1, d)[0],
                     _pad2(params["b2"], 1, d)[0],
                     _pad2(params["b_lin"], 1, d)[0]])                     # [3, D] f32

    flops = 2 * (n_pad * d * d            # X @ W1
                 + n_pad * n_pad * d      # A_hat @ .
                 + n_pad * d * d          # H @ W2
                 + k_pad * n_pad * d      # A_hat[index01] @ .
                 + k_pad * d * d)         # linear
    bytes_accessed = (2 * (x_p.size + a_p.size + a_sel.size + w_p.size)
                      + 4 * b_p.size + 4 * k_pad * d)
    cost = pl.CostEstimate(flops=int(flops),
                           transcendentals=int(k * out_dim),
                           bytes_accessed=int(bytes_accessed))

    vmem = pl.BlockSpec(memory_space=pltpu.MemorySpace.VMEM)
    out_pad = pl.pallas_call(
        _edge_conv_kernel,
        out_shape=jax.ShapeDtypeStruct((k_pad, d), jnp.float32),   # lane-dense
        in_specs=[vmem] * 5,
        out_specs=vmem,
        cost_estimate=cost,
    )(x_p, a_p, a_sel, w_p, b_p)

    # crop padding, restore [1, K, output_dim] (the .unsqueeze(0))
    return out_pad[:k, :out_dim][None]


# ---------------------------------------------------------------------------
# Deterministic synthetic parameters
# ---------------------------------------------------------------------------
def init_params(key, input_dim, hidden_dim, output_dim):
    k1, k2, k3 = jax.random.split(key, 3)
    return {
        "w1": 0.1 * jax.random.normal(k1, (2 * input_dim, hidden_dim), jnp.float32),
        "b1": jnp.zeros((1, hidden_dim), jnp.float32),
        "w2": 0.1 * jax.random.normal(k2, (hidden_dim, hidden_dim), jnp.float32),
        "b2": jnp.zeros((1, hidden_dim), jnp.float32),
        "w_lin": 0.1 * jax.random.normal(k3, (hidden_dim, output_dim), jnp.float32),
        "b_lin": jnp.zeros((1, output_dim), jnp.float32),
    }


if __name__ == "__main__":
    key = jax.random.PRNGKey(0)
    k_x, k_p = jax.random.split(key)

    num_nodes = 10      # graph nodes
    input_dim = 4
    hidden_dim = 8
    output_dim = 1

    # node features [N, input_dim]
    x = jax.random.normal(k_x, (num_nodes, input_dim), jnp.float32)

    # graph edges (E_g = 16) -> line graph has 16 nodes
    g_src = jnp.array([0, 1, 2, 3, 4, 5, 6, 7, 8, 9, 0, 2, 4, 6, 8, 1], jnp.int32)
    g_dst = jnp.array([1, 2, 3, 4, 5, 6, 7, 8, 9, 0, 5, 7, 9, 1, 3, 6], jnp.int32)
    g_edge_index = jnp.stack([g_src, g_dst])                  # [2, 16]

    # line-graph edges among the 16 line-graph nodes (made symmetric)
    lg_pairs = jnp.array(
        [[0, 1], [1, 2], [2, 3], [3, 4], [4, 5], [5, 6], [6, 7], [7, 8],
         [8, 9], [9, 10], [10, 11], [11, 12], [12, 13], [13, 14], [14, 15],
         [15, 0], [0, 8], [2, 10], [4, 12], [6, 14]], dtype=jnp.int32)
    lg_edge_index = jnp.concatenate([lg_pairs.T, lg_pairs[:, ::-1].T], axis=1)

    # rows to select (indices of the two "query" line-graph nodes)
    index01 = jnp.array([0, 1], jnp.int32)

    params = init_params(k_p, input_dim, hidden_dim, output_dim)

    # jit the whole forward so the gcn_norm / padding glue compiles once with the kernel
    fwd = jax.jit(edge_conv_gnn_forward)
    out = fwd(params, x, g_edge_index, lg_edge_index, index01)
    out = jax.block_until_ready(out)

    assert out.shape == (1, index01.shape[0], output_dim)
    assert bool(jnp.all(jnp.isfinite(out)))
    assert bool(jnp.all((out > 0.0) & (out < 1.0)))   # sigmoid range sanity
    print("KERNEL_OK")
</pallas_src>

<mosaic_0001>
module attributes {stable_mosaic.version = 11 : i64} {
  func.func @_edge_conv_kernel(%arg0: memref<16x128xbf16, #tpu.memory_space<vmem>>, %arg1: memref<16x16xbf16, #tpu.memory_space<vmem>>, %arg2: memref<8x16xbf16, #tpu.memory_space<vmem>>, %arg3: memref<3x128x128xbf16, #tpu.memory_space<vmem>>, %arg4: memref<3x128xf32, #tpu.memory_space<vmem>>, %arg5: memref<8x128xf32, #tpu.memory_space<vmem>>) attributes {dimension_semantics = [], scalar_prefetch = 0 : i64, scratch_operands = 0 : i64, tpu.core_type = #tpu.core_type<tc>} {
    %c0 = arith.constant 0 : index
    %c0_0 = arith.constant 0 : index
    %0 = vector.load %arg0[%c0, %c0_0] : memref<16x128xbf16, #tpu.memory_space<vmem>>, vector<16x128xbf16>
    %c0_1 = arith.constant 0 : index
    %c0_2 = arith.constant 0 : index
    %c0_3 = arith.constant 0 : index
    %1 = vector.load %arg3[%c0_1, %c0_2, %c0_3] : memref<3x128x128xbf16, #tpu.memory_space<vmem>>, vector<1x128x128xbf16>
    %2 = vector.shape_cast %1 : vector<1x128x128xbf16> to vector<128x128xbf16>
    %cst = arith.constant dense<0.000000e+00> : vector<16x128xf32>
    %3 = tpu.matmul %0, %2, %cst {dimension_numbers = #tpu.dot_dimension_numbers<[1], [0], [0], [1], [0, 0, 1, 1], [], []>} : vector<16x128xbf16>, vector<128x128xbf16>, vector<16x128xf32> -> vector<16x128xf32>
    %c0_4 = arith.constant 0 : index
    %c0_5 = arith.constant 0 : index
    %4 = vector.load %arg1[%c0_4, %c0_5] : memref<16x16xbf16, #tpu.memory_space<vmem>>, vector<16x16xbf16>
    %5 = arith.truncf %3 : vector<16x128xf32> to vector<16x128xbf16>
    %cst_6 = arith.constant dense<0.000000e+00> : vector<16x128xf32>
    %6 = tpu.matmul %4, %5, %cst_6 {dimension_numbers = #tpu.dot_dimension_numbers<[1], [0], [0], [1], [0, 0, 1, 1], [], []>} : vector<16x16xbf16>, vector<16x128xbf16>, vector<16x128xf32> -> vector<16x128xf32>
    %c0_7 = arith.constant 0 : index
    %c0_8 = arith.constant 0 : index
    %7 = vector.load %arg4[%c0_7, %c0_8] : memref<3x128xf32, #tpu.memory_space<vmem>>, vector<1x128xf32>
    %8 = vector.broadcast %7 : vector<1x128xf32> to vector<16x128xf32>
    %9 = arith.addf %6, %8 : vector<16x128xf32>
    %cst_9 = arith.constant 0.000000e+00 : f32
    %10 = vector.broadcast %cst_9 : f32 to vector<16x128xf32>
    %11 = arith.maximumf %9, %10 : vector<16x128xf32>
    %12 = arith.truncf %11 : vector<16x128xf32> to vector<16x128xbf16>
    %c1 = arith.constant 1 : index
    %c0_10 = arith.constant 0 : index
    %c0_11 = arith.constant 0 : index
    %13 = vector.load %arg3[%c1, %c0_10, %c0_11] : memref<3x128x128xbf16, #tpu.memory_space<vmem>>, vector<1x128x128xbf16>
    %14 = vector.shape_cast %13 : vector<1x128x128xbf16> to vector<128x128xbf16>
    %cst_12 = arith.constant dense<0.000000e+00> : vector<16x128xf32>
    %15 = tpu.matmul %12, %14, %cst_12 {dimension_numbers = #tpu.dot_dimension_numbers<[1], [0], [0], [1], [0, 0, 1, 1], [], []>} : vector<16x128xbf16>, vector<128x128xbf16>, vector<16x128xf32> -> vector<16x128xf32>
    %c0_13 = arith.constant 0 : index
    %c0_14 = arith.constant 0 : index
    %16 = vector.load %arg2[%c0_13, %c0_14] : memref<8x16xbf16, #tpu.memory_space<vmem>>, vector<8x16xbf16>
    %17 = arith.truncf %15 : vector<16x128xf32> to vector<16x128xbf16>
    %cst_15 = arith.constant dense<0.000000e+00> : vector<8x128xf32>
    %18 = tpu.matmul %16, %17, %cst_15 {dimension_numbers = #tpu.dot_dimension_numbers<[1], [0], [0], [1], [0, 0, 1, 1], [], []>} : vector<8x16xbf16>, vector<16x128xbf16>, vector<8x128xf32> -> vector<8x128xf32>
    %c1_16 = arith.constant 1 : index
    %c0_17 = arith.constant 0 : index
    %19 = vector.load %arg4[%c1_16, %c0_17] : memref<3x128xf32, #tpu.memory_space<vmem>>, vector<1x128xf32>
    %20 = vector.broadcast %19 : vector<1x128xf32> to vector<8x128xf32>
    %21 = arith.addf %18, %20 : vector<8x128xf32>
    %cst_18 = arith.constant 0.000000e+00 : f32
    %22 = vector.broadcast %cst_18 : f32 to vector<8x128xf32>
    %23 = arith.maximumf %21, %22 : vector<8x128xf32>
    %24 = arith.truncf %23 : vector<8x128xf32> to vector<8x128xbf16>
    %c2 = arith.constant 2 : index
    %c0_19 = arith.constant 0 : index
    %c0_20 = arith.constant 0 : index
    %25 = vector.load %arg3[%c2, %c0_19, %c0_20] : memref<3x128x128xbf16, #tpu.memory_space<vmem>>, vector<1x128x128xbf16>
    %26 = vector.shape_cast %25 : vector<1x128x128xbf16> to vector<128x128xbf16>
    %cst_21 = arith.constant dense<0.000000e+00> : vector<8x128xf32>
    %27 = tpu.matmul %24, %26, %cst_21 {dimension_numbers = #tpu.dot_dimension_numbers<[1], [0], [0], [1], [0, 0, 1, 1], [], []>} : vector<8x128xbf16>, vector<128x128xbf16>, vector<8x128xf32> -> vector<8x128xf32>
    %c2_22 = arith.constant 2 : index
    %c0_23 = arith.constant 0 : index
    %28 = vector.load %arg4[%c2_22, %c0_23] : memref<3x128xf32, #tpu.memory_space<vmem>>, vector<1x128xf32>
    %29 = vector.broadcast %28 : vector<1x128xf32> to vector<8x128xf32>
    %30 = arith.addf %27, %29 : vector<8x128xf32>
    %31 = arith.negf %30 : vector<8x128xf32>
    %32 = math.exp %31 : vector<8x128xf32>
    %cst_24 = arith.constant 1.000000e+00 : f32
    %33 = vector.broadcast %cst_24 : f32 to vector<8x128xf32>
    %34 = arith.addf %33, %32 : vector<8x128xf32>
    %35 = arith.divf %33, %34 : vector<8x128xf32>
    %c0_25 = arith.constant 0 : index
    %c0_26 = arith.constant 0 : index
    %36 = vector.load %arg5[%c0_25, %c0_26] : memref<8x128xf32, #tpu.memory_space<vmem>>, vector<8x128xf32>
    tpu.vector_store %arg5[%c0_25, %c0_26], %35 {strides = array<i32>} : memref<8x128xf32, #tpu.memory_space<vmem>>, vector<8x128xf32>,
    return
  }
}

</mosaic_0001>

<llo_original>
// kernel: edge_conv_gnn_forward.1
$region0: #{edge_conv_gnn_forward.1}
  #allocation0 [shape = 'u32[]', space=smem, size = 0x4, offset = 0x4, fixed_abs, tag = 'smem constant byte address 0x4 - core index']
  #allocation1 [shape = 'u32[144,128]{1,0:T(1,128)}', space=vmem, size = 0x12000, scoped, tag = 'internal scratch']
  %s0 = inlined_call_operand.vmem [shape: bf16[16,128], index: 0, kind: input, shape index: {}]
  %s1 = inlined_call_operand.vmem [shape: bf16[16,16], index: 1, kind: input, shape index: {}]
  %s2 = inlined_call_operand.vmem [shape: bf16[8,16], index: 2, kind: input, shape index: {}]
  %s3 = inlined_call_operand.vmem [shape: bf16[3,128,128], index: 3, kind: input, shape index: {}]
  %s4 = inlined_call_operand.vmem [shape: f32[3,128], index: 4, kind: input, shape index: {}]
  %s5 = inlined_call_operand.vmem [shape: f32[8,128], index: 5, kind: output, shape index: {}]
  %s6 = sld [smem:[#allocation0]]
  $region30: #{edge_conv_gnn_forward.1} parent=0
    _
  %s8 = ssub.s32 1, %s6
  %s9 = scalar_select 0, %s8, %s6
  // Predicated region
  $region2: #{edge_conv_gnn_forward.1} parent=0 // pred_check
    _
  $region3: #{edge_conv_gnn_forward.1} parent=0 // pred_check_branch
    %11 = sbr.rel (0) target = $region5
  $region4: #{edge_conv_gnn_forward.1} parent=0 // pred_region
    _
  $region5: #{edge_conv_gnn_forward.1} parent=0 // pred_fallthru
    _
  // Predicated region
  $region6: #{edge_conv_gnn_forward.1} parent=0 // pred_check
    _
  $region7: #{edge_conv_gnn_forward.1} parent=0 // pred_check_branch
    %13 = sbr.rel (0) target = $region9
  $region8: #{edge_conv_gnn_forward.1} parent=0 // pred_region
    _
  $region9: #{edge_conv_gnn_forward.1} parent=0 // pred_fallthru
    _
  // Predicated region
  $region10: #{edge_conv_gnn_forward.1} parent=0 // pred_check
    _
  $region11: #{edge_conv_gnn_forward.1} parent=0 // pred_check_branch
    %15 = sbr.rel (0) target = $region13
  $region12: #{edge_conv_gnn_forward.1} parent=0 // pred_region
    _
  $region13: #{edge_conv_gnn_forward.1} parent=0 // pred_fallthru
    _
  // Predicated region
  $region14: #{edge_conv_gnn_forward.1} parent=0 // pred_check
    _
  $region15: #{edge_conv_gnn_forward.1} parent=0 // pred_check_branch
    %17 = sbr.rel (0) target = $region17
  $region16: #{edge_conv_gnn_forward.1} parent=0 // pred_region
    _
  $region17: #{edge_conv_gnn_forward.1} parent=0 // pred_fallthru
    _
  // Predicated region
  $region18: #{edge_conv_gnn_forward.1} parent=0 // pred_check
    _
  $region19: #{edge_conv_gnn_forward.1} parent=0 // pred_check_branch
    %19 = sbr.rel (0) target = $region21
  $region20: #{edge_conv_gnn_forward.1} parent=0 // pred_region
    _
  $region21: #{edge_conv_gnn_forward.1} parent=0 // pred_fallthru
    _
  %v21 = vld [vmem:[%s0] sm:$0xf]
  %v22 = vld [vmem:[%s0 + $0x4] sm:$0xf]
  %v23 = vld [vmem:[%s3] sm:$0xf]
  %v24 = vld [vmem:[%s3 + $0x4] sm:$0xf]
  %v25 = vld [vmem:[%s3 + $0x8] sm:$0xf]
  %v26 = vld [vmem:[%s3 + $0xc] sm:$0xf]
  %v27 = vld [vmem:[%s3 + $0x10] sm:$0xf]
  %v28 = vld [vmem:[%s3 + $0x14] sm:$0xf]
  %v29 = vld [vmem:[%s3 + $0x18] sm:$0xf]
  %v30 = vld [vmem:[%s3 + $0x1c] sm:$0xf]
  %v31 = vld [vmem:[%s3 + $0x20] sm:$0xf]
  %v32 = vld [vmem:[%s3 + $0x24] sm:$0xf]
  %v33 = vld [vmem:[%s3 + $0x28] sm:$0xf]
  %v34 = vld [vmem:[%s3 + $0x2c] sm:$0xf]
  %v35 = vld [vmem:[%s3 + $0x30] sm:$0xf]
  %v36 = vld [vmem:[%s3 + $0x34] sm:$0xf]
  %v37 = vld [vmem:[%s3 + $0x38] sm:$0xf]
  %v38 = vld [vmem:[%s3 + $0x3c] sm:$0xf]
  %v41 = vunpack.c.l.b16 %v21
  %v42 = vunpack.c.l.b16 %v22
  %v43 = vpack.c.b16 %v42, %v41
  %v61 = vunpack.c.l.b16 %v23
  %v62 = vunpack.c.l.b16 %v24
  %v63 = vunpack.c.l.b16 %v25
  %v64 = vunpack.c.l.b16 %v26
  %v65 = vunpack.c.l.b16 %v27
  %v66 = vunpack.c.l.b16 %v28
  %v67 = vunpack.c.l.b16 %v29
  %v68 = vunpack.c.l.b16 %v30
  %v69 = vunpack.c.l.b16 %v31
  %v70 = vunpack.c.l.b16 %v32
  %v71 = vunpack.c.l.b16 %v33
  %v72 = vunpack.c.l.b16 %v34
  %v73 = vunpack.c.l.b16 %v35
  %v74 = vunpack.c.l.b16 %v36
  %v75 = vunpack.c.l.b16 %v37
  %v76 = vunpack.c.l.b16 %v38
  %v77 = vpack.c.b16 %v62, %v61
  %v78 = vpack.c.b16 %v64, %v63
  %v79 = vpack.c.b16 %v66, %v65
  %v80 = vpack.c.b16 %v68, %v67
  %v81 = vpack.c.b16 %v70, %v69
  %v82 = vpack.c.b16 %v72, %v71
  %v83 = vpack.c.b16 %v74, %v73
  %v84 = vpack.c.b16 %v76, %v75
  %93 = vmatprep.subr.bf16.mxu0 0
  %94 = vmatpush1.bf16.msra.mxu0 %v77
  %95 = vmatprep.subr.bf16.mxu0 0
  %96 = vmatpush1.bf16.msra.mxu0 %v78
  %97 = vmatprep.subr.bf16.mxu0 0
  %98 = vmatpush1.bf16.msra.mxu0 %v79
  %99 = vmatprep.subr.bf16.mxu0 0
  %100 = vmatpush1.bf16.msra.mxu0 %v80
  %101 = vmatprep.subr.bf16.mxu0 0
  %102 = vmatpush1.bf16.msra.mxu0 %v81
  %103 = vmatprep.subr.bf16.mxu0 0
  %104 = vmatpush1.bf16.msra.mxu0 %v82
  %105 = vmatprep.subr.bf16.mxu0 0
  %106 = vmatpush1.bf16.msra.mxu0 %v83
  %107 = vmatprep.subr.bf16.mxu0 0
  %108 = vmatpush1.bf16.msra.mxu0 %v84
  %109 = vmatprep.subr.bf16.mxu0 0
  %110 = vmatpush1.bf16.msra.mxu0 0
  %111 = vmatprep.subr.bf16.mxu0 0
  %112 = vmatpush1.bf16.msra.mxu0 0
  %113 = vmatprep.subr.bf16.mxu0 0
  %114 = vmatpush1.bf16.msra.mxu0 0
  %115 = vmatprep.subr.bf16.mxu0 0
  %116 = vmatpush1.bf16.msra.mxu0 0
  %117 = vmatprep.subr.bf16.mxu0 0
  %118 = vmatpush1.bf16.msra.mxu0 0
  %119 = vmatprep.subr.bf16.mxu0 0
  %120 = vmatpush1.bf16.msra.mxu0 0
  %121 = vmatprep.subr.bf16.mxu0 0
  %122 = vmatpush1.bf16.msra.mxu0 0
  %123 = vmatprep.subr.bf16.mxu0 0
  %124 = vmatpush1.bf16.msra.mxu0 0
  %125 = vmatprep.mubr.bf16.mxu0 0
  %126 = vmatmul.mubr.bf16.gmra.mrb[0].mxu0 %v43
  %v127 = vpop.f32.mrb[0].mxu0
  %v128 = vadd.f32 0.0, %v127
  %v129 = vpop.f32.mrb[0].mxu0
  %v130 = vpop.f32.mrb[0].mxu0
  %v131 = vadd.f32 0.0, %v130
  %v132 = vpop.f32.mrb[0].mxu0
  %133 = vdwg.mxu0
  %v134 = vld [vmem:[%s1] sm:$0xf]
  %v135 = vld [vmem:[%s1 + $0x4] sm:$0xf]
  %v136 = vpack.c.bf16 %v131, %v128
  %v137 = vld [vmem:[%s4] sm:$0x1]
  %v138 = vlaneseq
  %v139 = vshrl.u32 %v138, 7
  %v140 = vsub.s32 0, %v139
  %v141 = vrot.slane %v137, %v140
  %v144 = vunpack.c.l.b16 %v134
  %v145 = vunpack.c.l.b16 %v135
  %v146 = vpack.c.b16 %v145, %v144
  %vm147 = vcmask 130048
  %v149 = vsel %vm147, %v146, 0
  %151 = vmatprep.subr.bf16.mxu0 0
  %152 = vmatpush1.bf16.msra.mxu0 %v136
  %153 = vmatprep.subr.bf16.mxu0 0
  %154 = vmatpush1.bf16.msra.mxu0 0
  %155 = vmatprep.subr.bf16.mxu0 0
  %156 = vmatpush1.bf16.msra.mxu0 0
  %157 = vmatprep.subr.bf16.mxu0 0
  %158 = vmatpush1.bf16.msra.mxu0 0
  %159 = vmatprep.subr.bf16.mxu0 0
  %160 = vmatpush1.bf16.msra.mxu0 0
  %161 = vmatprep.subr.bf16.mxu0 0
  %162 = vmatpush1.bf16.msra.mxu0 0
  %163 = vmatprep.subr.bf16.mxu0 0
  %164 = vmatpush1.bf16.msra.mxu0 0
  %165 = vmatprep.subr.bf16.mxu0 0
  %166 = vmatpush1.bf16.msra.mxu0 0
  %167 = vmatprep.subr.bf16.mxu0 0
  %168 = vmatpush1.bf16.msra.mxu0 0
  %169 = vmatprep.subr.bf16.mxu0 0
  %170 = vmatpush1.bf16.msra.mxu0 0
  %171 = vmatprep.subr.bf16.mxu0 0
  %172 = vmatpush1.bf16.msra.mxu0 0
  %173 = vmatprep.subr.bf16.mxu0 0
  %174 = vmatpush1.bf16.msra.mxu0 0
  %175 = vmatprep.subr.bf16.mxu0 0
  %176 = vmatpush1.bf16.msra.mxu0 0
  %177 = vmatprep.subr.bf16.mxu0 0
  %178 = vmatpush1.bf16.msra.mxu0 0
  %179 = vmatprep.subr.bf16.mxu0 0
  %180 = vmatpush1.bf16.msra.mxu0 0
  %181 = vmatprep.subr.bf16.mxu0 0
  %182 = vmatpush1.bf16.msra.mxu0 0
  %183 = vmatprep.mubr.bf16.mxu0 0
  %184 = vmatmul.mubr.bf16.gmra.mrb[0].mxu0 %v149
  %v185 = vpop.f32.mrb[0].mxu0
  %v186 = vadd.f32 %v141, %v185
  %v187 = vpop.f32.mrb[0].mxu0
  %v188 = vpop.f32.mrb[0].mxu0
  %v189 = vadd.f32 %v141, %v188
  %v190 = vpop.f32.mrb[0].mxu0
  %191 = vdwg.mxu0
  %v192 = vmax.f32 %v186, 0.0
  %v193 = vmax.f32 %v189, 0.0
  %v194 = vpack.c.bf16 %v193, %v192
  %s195 = scalar_lea.vmem %s3, 64
  %v196 = vld [vmem:[%s195] sm:$0xf]
  %v197 = vld [vmem:[%s195 + $0x4] sm:$0xf]
  %v198 = vld [vmem:[%s195 + $0x8] sm:$0xf]
  %v199 = vld [vmem:[%s195 + $0xc] sm:$0xf]
  %v200 = vld [vmem:[%s195 + $0x10] sm:$0xf]
  %v201 = vld [vmem:[%s195 + $0x14] sm:$0xf]
  %v202 = vld [vmem:[%s195 + $0x18] sm:$0xf]
  %v203 = vld [vmem:[%s195 + $0x1c] sm:$0xf]
  %v204 = vld [vmem:[%s195 + $0x20] sm:$0xf]
  %v205 = vld [vmem:[%s195 + $0x24] sm:$0xf]
  %v206 = vld [vmem:[%s195 + $0x28] sm:$0xf]
  %v207 = vld [vmem:[%s195 + $0x2c] sm:$0xf]
  %v208 = vld [vmem:[%s195 + $0x30] sm:$0xf]
  %v209 = vld [vmem:[%s195 + $0x34] sm:$0xf]
  %v210 = vld [vmem:[%s195 + $0x38] sm:$0xf]
  %v211 = vld [vmem:[%s195 + $0x3c] sm:$0xf]
  %v228 = vunpack.c.l.b16 %v196
  %v229 = vunpack.c.l.b16 %v197
  %v230 = vunpack.c.l.b16 %v198
  %v231 = vunpack.c.l.b16 %v199
  %v232 = vunpack.c.l.b16 %v200
  %v233 = vunpack.c.l.b16 %v201
  %v234 = vunpack.c.l.b16 %v202
  %v235 = vunpack.c.l.b16 %v203
  %v236 = vunpack.c.l.b16 %v204
  %v237 = vunpack.c.l.b16 %v205
  %v238 = vunpack.c.l.b16 %v206
  %v239 = vunpack.c.l.b16 %v207
  %v240 = vunpack.c.l.b16 %v208
  %v241 = vunpack.c.l.b16 %v209
  %v242 = vunpack.c.l.b16 %v210
  %v243 = vunpack.c.l.b16 %v211
  %v244 = vpack.c.b16 %v229, %v228
  %v245 = vpack.c.b16 %v231, %v230
  %v246 = vpack.c.b16 %v233, %v232
  %v247 = vpack.c.b16 %v235, %v234
  %v248 = vpack.c.b16 %v237, %v236
  %v249 = vpack.c.b16 %v239, %v238
  %v250 = vpack.c.b16 %v241, %v240
  %v251 = vpack.c.b16 %v243, %v242
  %260 = vmatprep.subr.bf16.mxu0 0
  %261 = vmatpush1.bf16.msra.mxu0 %v244
  %262 = vmatprep.subr.bf16.mxu0 0
  %263 = vmatpush1.bf16.msra.mxu0 %v245
  %264 = vmatprep.subr.bf16.mxu0 0
  %265 = vmatpush1.bf16.msra.mxu0 %v246
  %266 = vmatprep.subr.bf16.mxu0 0
  %267 = vmatpush1.bf16.msra.mxu0 %v247
  %268 = vmatprep.subr.bf16.mxu0 0
  %269 = vmatpush1.bf16.msra.mxu0 %v248
  %270 = vmatprep.subr.bf16.mxu0 0
  %271 = vmatpush1.bf16.msra.mxu0 %v249
  %272 = vmatprep.subr.bf16.mxu0 0
  %273 = vmatpush1.bf16.msra.mxu0 %v250
  %274 = vmatprep.subr.bf16.mxu0 0
  %275 = vmatpush1.bf16.msra.mxu0 %v251
  %276 = vmatprep.subr.bf16.mxu0 0
  %277 = vmatpush1.bf16.msra.mxu0 0
  %278 = vmatprep.subr.bf16.mxu0 0
  %279 = vmatpush1.bf16.msra.mxu0 0
  %280 = vmatprep.subr.bf16.mxu0 0
  %281 = vmatpush1.bf16.msra.mxu0 0
  %282 = vmatprep.subr.bf16.mxu0 0
  %283 = vmatpush1.bf16.msra.mxu0 0
  %284 = vmatprep.subr.bf16.mxu0 0
  %285 = vmatpush1.bf16.msra.mxu0 0
  %286 = vmatprep.subr.bf16.mxu0 0
  %287 = vmatpush1.bf16.msra.mxu0 0
  %288 = vmatprep.subr.bf16.mxu0 0
  %289 = vmatpush1.bf16.msra.mxu0 0
  %290 = vmatprep.subr.bf16.mxu0 0
  %291 = vmatpush1.bf16.msra.mxu0 0
  %292 = vmatprep.mubr.bf16.mxu0 0
  %293 = vmatmul.mubr.bf16.gmra.mrb[0].mxu0 %v194
  %v294 = vpop.f32.mrb[0].mxu0
  %v295 = vadd.f32 0.0, %v294
  %v296 = vpop.f32.mrb[0].mxu0
  %v297 = vpop.f32.mrb[0].mxu0
  %v298 = vadd.f32 0.0, %v297
  %v299 = vpop.f32.mrb[0].mxu0
  %300 = vdwg.mxu0
  %v301 = vld [vmem:[%s2] sm:$0xf]
  %v302 = vpack.c.bf16 %v298, %v295
  %v303 = vld [vmem:[%s4 + $0x1] sm:$0x1]
  %v304 = vlaneseq
  %v305 = vshrl.u32 %v304, 7
  %v306 = vsub.s32 0, %v305
  %v307 = vrot.slane %v303, %v306
  %v309 = vsel %vm147, %v301, 0
  %311 = vmatprep.subr.bf16.mxu0 0
  %312 = vmatpush1.bf16.msra.mxu0 %v302
  %313 = vmatprep.subr.bf16.mxu0 0
  %314 = vmatpush1.bf16.msra.mxu0 0
  %315 = vmatprep.subr.bf16.mxu0 0
  %316 = vmatpush1.bf16.msra.mxu0 0
  %317 = vmatprep.subr.bf16.mxu0 0
  %318 = vmatpush1.bf16.msra.mxu0 0
  %319 = vmatprep.subr.bf16.mxu0 0
  %320 = vmatpush1.bf16.msra.mxu0 0
  %321 = vmatprep.subr.bf16.mxu0 0
  %322 = vmatpush1.bf16.msra.mxu0 0
  %323 = vmatprep.subr.bf16.mxu0 0
  %324 = vmatpush1.bf16.msra.mxu0 0
  %325 = vmatprep.subr.bf16.mxu0 0
  %326 = vmatpush1.bf16.msra.mxu0 0
  %327 = vmatprep.subr.bf16.mxu0 0
  %328 = vmatpush1.bf16.msra.mxu0 0
  %329 = vmatprep.subr.bf16.mxu0 0
  %330 = vmatpush1.bf16.msra.mxu0 0
  %331 = vmatprep.subr.bf16.mxu0 0
  %332 = vmatpush1.bf16.msra.mxu0 0
  %333 = vmatprep.subr.bf16.mxu0 0
  %334 = vmatpush1.bf16.msra.mxu0 0
  %335 = vmatprep.subr.bf16.mxu0 0
  %336 = vmatpush1.bf16.msra.mxu0 0
  %337 = vmatprep.subr.bf16.mxu0 0
  %338 = vmatpush1.bf16.msra.mxu0 0
  %339 = vmatprep.subr.bf16.mxu0 0
  %340 = vmatpush1.bf16.msra.mxu0 0
  %341 = vmatprep.subr.bf16.mxu0 0
  %342 = vmatpush1.bf16.msra.mxu0 0
  %343 = vmatprep.mubr.bf16.mxu0 0
  %344 = vmatmul.mubr.bf16.gmra.mrb[0].mxu0 %v309
  %v345 = vpop.f32.mrb[0].mxu0
  %v346 = vadd.f32 %v307, %v345
  %v347 = vpop.f32.mrb[0].mxu0
  %v348 = vpop.f32.mrb[0].mxu0
  %v349 = vpop.f32.mrb[0].mxu0
  %350 = vdwg.mxu0
  %v351 = vmax.f32 %v346, 0.0
  %v352 = vpack.c.bf16 %v351, %v351
  %s353 = scalar_lea.vmem %s3, 128
  %v354 = vld [vmem:[%s353] sm:$0xf]
  %v355 = vld [vmem:[%s353 + $0x4] sm:$0xf]
  %v356 = vld [vmem:[%s353 + $0x8] sm:$0xf]
  %v357 = vld [vmem:[%s353 + $0xc] sm:$0xf]
  %v358 = vld [vmem:[%s353 + $0x10] sm:$0xf]
  %v359 = vld [vmem:[%s353 + $0x14] sm:$0xf]
  %v360 = vld [vmem:[%s353 + $0x18] sm:$0xf]
  %v361 = vld [vmem:[%s353 + $0x1c] sm:$0xf]
  %v362 = vld [vmem:[%s353 + $0x20] sm:$0xf]
  %v363 = vld [vmem:[%s353 + $0x24] sm:$0xf]
  %v364 = vld [vmem:[%s353 + $0x28] sm:$0xf]
  %v365 = vld [vmem:[%s353 + $0x2c] sm:$0xf]
  %v366 = vld [vmem:[%s353 + $0x30] sm:$0xf]
  %v367 = vld [vmem:[%s353 + $0x34] sm:$0xf]
  %v368 = vld [vmem:[%s353 + $0x38] sm:$0xf]
  %v369 = vld [vmem:[%s353 + $0x3c] sm:$0xf]
  %v370 = vld [vmem:[%s4 + $0x2] sm:$0x1]
  %v371 = vlaneseq
  %v372 = vshrl.u32 %v371, 7
  %v373 = vsub.s32 0, %v372
  %v374 = vrot.slane %v370, %v373
  %v391 = vunpack.c.l.b16 %v354
  %v392 = vunpack.c.l.b16 %v355
  %v393 = vunpack.c.l.b16 %v356
  %v394 = vunpack.c.l.b16 %v357
  %v395 = vunpack.c.l.b16 %v358
  %v396 = vunpack.c.l.b16 %v359
  %v397 = vunpack.c.l.b16 %v360
  %v398 = vunpack.c.l.b16 %v361
  %v399 = vunpack.c.l.b16 %v362
  %v400 = vunpack.c.l.b16 %v363
  %v401 = vunpack.c.l.b16 %v364
  %v402 = vunpack.c.l.b16 %v365
  %v403 = vunpack.c.l.b16 %v366
  %v404 = vunpack.c.l.b16 %v367
  %v405 = vunpack.c.l.b16 %v368
  %v406 = vunpack.c.l.b16 %v369
  %v407 = vpack.c.b16 %v392, %v391
  %v408 = vpack.c.b16 %v394, %v393
  %v409 = vpack.c.b16 %v396, %v395
  %v410 = vpack.c.b16 %v398, %v397
  %v411 = vpack.c.b16 %v400, %v399
  %v412 = vpack.c.b16 %v402, %v401
  %v413 = vpack.c.b16 %v404, %v403
  %v414 = vpack.c.b16 %v406, %v405
  %423 = vmatprep.subr.bf16.mxu0 0
  %424 = vmatpush1.bf16.msra.mxu0 %v407
  %425 = vmatprep.subr.bf16.mxu0 0
  %426 = vmatpush1.bf16.msra.mxu0 %v408
  %427 = vmatprep.subr.bf16.mxu0 0
  %428 = vmatpush1.bf16.msra.mxu0 %v409
  %429 = vmatprep.subr.bf16.mxu0 0
  %430 = vmatpush1.bf16.msra.mxu0 %v410
  %431 = vmatprep.subr.bf16.mxu0 0
  %432 = vmatpush1.bf16.msra.mxu0 %v411
  %433 = vmatprep.subr.bf16.mxu0 0
  %434 = vmatpush1.bf16.msra.mxu0 %v412
  %435 = vmatprep.subr.bf16.mxu0 0
  %436 = vmatpush1.bf16.msra.mxu0 %v413
  %437 = vmatprep.subr.bf16.mxu0 0
  %438 = vmatpush1.bf16.msra.mxu0 %v414
  %439 = vmatprep.subr.bf16.mxu0 0
  %440 = vmatpush1.bf16.msra.mxu0 0
  %441 = vmatprep.subr.bf16.mxu0 0
  %442 = vmatpush1.bf16.msra.mxu0 0
  %443 = vmatprep.subr.bf16.mxu0 0
  %444 = vmatpush1.bf16.msra.mxu0 0
  %445 = vmatprep.subr.bf16.mxu0 0
  %446 = vmatpush1.bf16.msra.mxu0 0
  %447 = vmatprep.subr.bf16.mxu0 0
  %448 = vmatpush1.bf16.msra.mxu0 0
  %449 = vmatprep.subr.bf16.mxu0 0
  %450 = vmatpush1.bf16.msra.mxu0 0
  %451 = vmatprep.subr.bf16.mxu0 0
  %452 = vmatpush1.bf16.msra.mxu0 0
  %453 = vmatprep.subr.bf16.mxu0 0
  %454 = vmatpush1.bf16.msra.mxu0 0
  %455 = vmatprep.mubr.bf16.mxu0 0
  %456 = vmatmul.mubr.bf16.gmra.mrb[0].mxu0 %v352
  %v457 = vpop.f32.mrb[0].mxu0
  %v458 = vadd.f32 %v374, %v457
  %v459 = vpop.f32.mrb[0].mxu0
  %v460 = vpop.f32.mrb[0].mxu0
  %v461 = vpop.f32.mrb[0].mxu0
  %462 = vdwg.mxu0
  %v463 = vxor.u32 %v458, 2147483648
  %v464 = vmul.f32 %v463, 1.442695
  %v465 = vpow.pop %v464
  %v466 = vadd.f32 %v465, 1.0
  %v467 = vrcp.pop %v466
  %v468 = vmul.f32 1.0, %v467
  %469 = vst [vmem:[%s5] sm:$0xff] %v468
  // Predicated region
  $region22: #{edge_conv_gnn_forward.1} parent=0 // pred_check
    _
  $region23: #{edge_conv_gnn_forward.1} parent=0 // pred_check_branch
    %471 = sbr.rel (0) target = $region25
  $region24: #{edge_conv_gnn_forward.1} parent=0 // pred_region
    _
  $region25: #{edge_conv_gnn_forward.1} parent=0 // pred_fallthru
    _
  // Predicated region
  $region26: #{edge_conv_gnn_forward.1} parent=0 // pred_check
    _
  $region27: #{edge_conv_gnn_forward.1} parent=0 // pred_check_branch
    %473 = sbr.rel (0) target = $region29
  $region28: #{edge_conv_gnn_forward.1} parent=0 // pred_region
    _
  $region29: #{edge_conv_gnn_forward.1} parent=0 // pred_fallthru
    _

</llo_original>
